<compile_context>
chip_gen: v7x
topology: tpu7x:2x2x1
jax: 0.10.0
libtpu: 0.0.40
codegen_flags: <defaults>
</compile_context>

<pallas_src>
import jax
import jax.numpy as jnp
from jax.experimental import pallas as pl
from jax.experimental.pallas import tpu as pltpu


def linear_mixing_kernel(m_ref, rr_ref, f_ref, is_ref, ihat_ref, loss_ref):
    m = m_ref[...]          # (N, K)  f32
    rr = rr_ref[...]        # (1, K)
    f = f_ref[...]          # (K, W)
    Is = is_ref[...]        # (N, W)

    K = f_ref.shape[0]
    fsoc = f_ref[K - 1:K, :]            # (1, W) -- SOC spectrum = last row of fFull

    # mFull = (mFull.t() / sum(mFull, axis=1)).t()  -> row-normalize
    # (reciprocal-multiply instead of dividing the (N,K) tensor)
    inv_row = pl.reciprocal(jnp.sum(m, axis=1, keepdims=True))   # (N, 1)
    m_norm = m * inv_row

    # torchA: tA = mFull / rrFull ; A = tA / sum(tA)  (global scalar sum)
    inv_rr = pl.reciprocal(rr)                                   # (1, K)
    tA = m_norm * inv_rr
    A = tA * (1.0 / jnp.sum(tA))        # scalar reciprocal, then broadcast-multiply

    # Ihat = A @ fFull  (single MXU pass at these sizes)
    ihat = jnp.dot(A, f, preferred_element_type=jnp.float32)     # (N, W)
    ihat_ref[...] = ihat

    zero = jnp.float32(0.0)

    # abundance out-of-bounds penalty
    oobsA = jnp.sum(jnp.where(m_norm < 0.001, (m_norm - 0.001) ** 2, zero))
    oobsA = oobsA + jnp.sum(
        jnp.where(m_norm > 0.999, (m_norm + 0.001 - 1.0) ** 2, zero))

    # fsoc out-of-bounds penalty
    oobsF = jnp.sum(jnp.where(fsoc < 0.0, fsoc ** 2, zero))
    oobsF = oobsF + jnp.sum(jnp.where(fsoc > 1.0, (1.0 - fsoc) ** 2, zero))

    # smoothness penalties: sum(diff(fsoc)^2) + sum(diff(diff(fsoc))^2)
    # (one vreg of work; kernel is launch-bound so slice-based diffs are fine)
    d1 = fsoc[:, 1:] - fsoc[:, :-1]
    d2 = d1[:, 1:] - d1[:, :-1]
    diffloss = jnp.sum(d1 ** 2) + jnp.sum(d2 ** 2)

    # least squares + combined loss (scalar -> SMEM)
    lsq = jnp.sum((Is - ihat) ** 2)
    loss_ref[0, 0] = lsq * (1.0 + 100.0 * diffloss + 100.0 * oobsA + 1000.0 * oobsF)


def linear_mixing_forward(ms, msocs, rhorad, rrsoc, fs, fsoc, Is):
    """Tiny concats in plain JAX; normalization/matmul/reductions in the kernel."""
    mFull = jnp.concatenate([ms, msocs[:, None]], axis=1)      # (N, K)
    rrFull = jnp.concatenate([rhorad, rrsoc])[None, :]         # (1, K)
    fFull = jnp.concatenate([fs, fsoc[None, :]], axis=0)       # (K, W), last row = fsoc

    N, K = mFull.shape
    W = fFull.shape[1]

    ihat, loss = pl.pallas_call(
        linear_mixing_kernel,
        out_shape=(
            jax.ShapeDtypeStruct((N, W), jnp.float32),
            jax.ShapeDtypeStruct((1, 1), jnp.float32),
        ),
        # No grid: single invocation, whole arrays resident in VMEM.
        in_specs=[
            pl.BlockSpec(memory_space=pltpu.MemorySpace.VMEM),   # mFull
            pl.BlockSpec(memory_space=pltpu.MemorySpace.VMEM),   # rrFull
            pl.BlockSpec(memory_space=pltpu.MemorySpace.VMEM),   # fFull
            pl.BlockSpec(memory_space=pltpu.MemorySpace.VMEM),   # Is
        ],
        out_specs=(
            pl.BlockSpec(memory_space=pltpu.MemorySpace.VMEM),   # Ihat (lane-dense W)
            pl.BlockSpec(memory_space=pltpu.MemorySpace.SMEM),   # scalar loss
        ),
    )(mFull, rrFull, fFull, Is)
    return loss[0, 0], ihat


def reference_forward(ms, msocs, rhorad, rrsoc, fs, fsoc, Is):
    """Pure-JAX replica of the PyTorch forward (for correctness check)."""
    mFull = jnp.concatenate([ms, msocs[:, None]], axis=1)
    mFull = mFull / jnp.sum(mFull, axis=1, keepdims=True)
    rrFull = jnp.concatenate([rhorad, rrsoc])
    fFull = jnp.concatenate([fs, fsoc[None, :]], axis=0)
    tA = mFull / rrFull
    A = tA / jnp.sum(tA)
    Ihat = A @ fFull
    oobsA = jnp.sum((mFull < 0.001) * (mFull - 0.001) ** 2)
    oobsA = oobsA + jnp.sum((mFull > 0.999) * (mFull + 0.001 - 1.0) ** 2)
    oobsF = jnp.sum((fsoc < 0.0) * fsoc ** 2)
    oobsF = oobsF + jnp.sum((fsoc > 1.0) * (1.0 - fsoc) ** 2)
    d1 = jnp.diff(fsoc)
    diffloss = jnp.sum(d1 ** 2) + jnp.sum(jnp.diff(d1) ** 2)
    lsq = jnp.sum((Is - Ihat) ** 2)
    loss = lsq * (1.0 + 100.0 * diffloss + 100.0 * oobsA + 1000.0 * oobsF)
    return loss, Ihat


if __name__ == "__main__":
    # Small synthetic shapes consistent with the module:
    #   KEndmembers = 16 (15 mineral endmembers + SOC), 128 wavelengths, 8 pits.
    N, Km1, W = 8, 15, 128

    key = jax.random.PRNGKey(0)
    k = jax.random.split(key, 7)
    ms = jax.random.uniform(k[0], (N, Km1), jnp.float32, 0.1, 1.0)    # nn.Parameter seedMs
    msocs = jax.random.uniform(k[1], (N,), jnp.float32, 0.01, 0.2)    # SOC masses (input y[0])
    rhorad = jax.random.uniform(k[2], (Km1,), jnp.float32, 0.5, 2.0)  # fixed rho*rad
    rrsoc = jax.random.uniform(k[3], (1,), jnp.float32, 0.5, 2.0)     # nn.Parameter seedrrsoc
    fs = jax.random.uniform(k[4], (Km1, W), jnp.float32)              # fixed endmember spectra
    fsoc = jax.random.uniform(k[5], (W,), jnp.float32)                # nn.Parameter seedFsoc
    Is = jax.random.uniform(k[6], (N, W), jnp.float32)                # observed spectra (y[1])
    # Imax (y[2]) is unused in the PyTorch forward; omitted here.

    loss, ihat = linear_mixing_forward(ms, msocs, rhorad, rrsoc, fs, fsoc, Is)
    jax.block_until_ready((loss, ihat))

    loss_ref, ihat_ref = reference_forward(ms, msocs, rhorad, rrsoc, fs, fsoc, Is)
    assert jnp.allclose(ihat, ihat_ref, rtol=1e-3, atol=1e-4), "Ihat mismatch"
    assert jnp.allclose(loss, loss_ref, rtol=1e-3, atol=1e-4), "loss mismatch"

    print("KERNEL_OK")
</pallas_src>

<mosaic_0001>
module attributes {stable_mosaic.version = 11 : i64} {
  func.func @linear_mixing_kernel(%arg0: memref<8x16xf32, #tpu.memory_space<vmem>>, %arg1: memref<1x16xf32, #tpu.memory_space<vmem>>, %arg2: memref<16x128xf32, #tpu.memory_space<vmem>>, %arg3: memref<8x128xf32, #tpu.memory_space<vmem>>, %arg4: memref<8x128xf32, #tpu.memory_space<vmem>>, %arg5: memref<1x1xf32, #tpu.memory_space<smem>>) attributes {dimension_semantics = [], scalar_prefetch = 0 : i64, scratch_operands = 0 : i64, tpu.core_type = #tpu.core_type<tc>} {
    %c0 = arith.constant 0 : index
    %c0_0 = arith.constant 0 : index
    %0 = vector.load %arg0[%c0, %c0_0] : memref<8x16xf32, #tpu.memory_space<vmem>>, vector<8x16xf32>
    %c0_1 = arith.constant 0 : index
    %c0_2 = arith.constant 0 : index
    %1 = vector.load %arg1[%c0_1, %c0_2] : memref<1x16xf32, #tpu.memory_space<vmem>>, vector<1x16xf32>
    %c0_3 = arith.constant 0 : index
    %c0_4 = arith.constant 0 : index
    %2 = vector.load %arg2[%c0_3, %c0_4] : memref<16x128xf32, #tpu.memory_space<vmem>>, vector<16x128xf32>
    %c0_5 = arith.constant 0 : index
    %c0_6 = arith.constant 0 : index
    %3 = vector.load %arg3[%c0_5, %c0_6] : memref<8x128xf32, #tpu.memory_space<vmem>>, vector<8x128xf32>
    %c15 = arith.constant 15 : index
    %c0_7 = arith.constant 0 : index
    %4 = vector.load %arg2[%c15, %c0_7] : memref<16x128xf32, #tpu.memory_space<vmem>>, vector<1x128xf32>
    %cst = arith.constant dense<0.000000e+00> : vector<8xf32>
    %5 = vector.multi_reduction <add>, %0, %cst [1] : vector<8x16xf32> to vector<8xf32>
    %6 = vector.shape_cast %5 : vector<8xf32> to vector<8x1xf32>
    %7 = tpu.reciprocal %6 : vector<8x1xf32> -> vector<8x1xf32>
    %8 = vector.broadcast %7 : vector<8x1xf32> to vector<8x16xf32>
    %9 = arith.mulf %0, %8 : vector<8x16xf32>
    %10 = tpu.reciprocal %1 : vector<1x16xf32> -> vector<1x16xf32>
    %11 = vector.broadcast %10 : vector<1x16xf32> to vector<8x16xf32>
    %12 = arith.mulf %9, %11 : vector<8x16xf32>
    %13 = vector.shape_cast %12 : vector<8x16xf32> to vector<1x8x16xf32>
    %cst_8 = arith.constant dense<0.000000e+00> : vector<1xf32>
    %14 = vector.multi_reduction <add>, %13, %cst_8 [1, 2] : vector<1x8x16xf32> to vector<1xf32>
    %15 = vector.shape_cast %14 : vector<1xf32> to vector<1x1x1xf32>
    %16 = vector.extract %15[0, 0, 0] : f32 from vector<1x1x1xf32>
    %cst_9 = arith.constant 1.000000e+00 : f32
    %17 = arith.divf %cst_9, %16 : f32
    %18 = vector.broadcast %17 : f32 to vector<8x16xf32>
    %19 = arith.mulf %12, %18 : vector<8x16xf32>
    %cst_10 = arith.constant dense<0.000000e+00> : vector<8x128xf32>
    %20 = tpu.matmul %19, %2, %cst_10 {dimension_numbers = #tpu.dot_dimension_numbers<[1], [0], [0], [1], [0, 0, 1, 1], [], []>} : vector<8x16xf32>, vector<16x128xf32>, vector<8x128xf32> -> vector<8x128xf32>
    %c0_11 = arith.constant 0 : index
    %c0_12 = arith.constant 0 : index
    %21 = vector.load %arg4[%c0_11, %c0_12] : memref<8x128xf32, #tpu.memory_space<vmem>>, vector<8x128xf32>
    tpu.vector_store %arg4[%c0_11, %c0_12], %20 {strides = array<i32>} : memref<8x128xf32, #tpu.memory_space<vmem>>, vector<8x128xf32>,
    %cst_13 = arith.constant 1.000000e-03 : f32
    %22 = vector.broadcast %cst_13 : f32 to vector<8x16xf32>
    %23 = arith.cmpf olt, %9, %22 : vector<8x16xf32>
    %cst_14 = arith.constant 1.000000e-03 : f32
    %24 = vector.broadcast %cst_14 : f32 to vector<8x16xf32>
    %25 = arith.subf %9, %24 : vector<8x16xf32>
    %26 = arith.mulf %25, %25 : vector<8x16xf32>
    %cst_15 = arith.constant 0.000000e+00 : f32
    %27 = vector.broadcast %cst_15 : f32 to vector<8x16xf32>
    %28 = arith.select %23, %26, %27 : vector<8x16xi1>, vector<8x16xf32>
    %29 = vector.shape_cast %28 : vector<8x16xf32> to vector<1x8x16xf32>
    %cst_16 = arith.constant dense<0.000000e+00> : vector<1xf32>
    %30 = vector.multi_reduction <add>, %29, %cst_16 [1, 2] : vector<1x8x16xf32> to vector<1xf32>
    %31 = vector.shape_cast %30 : vector<1xf32> to vector<1x1x1xf32>
    %32 = vector.extract %31[0, 0, 0] : f32 from vector<1x1x1xf32>
    %cst_17 = arith.constant 9.990000e-01 : f32
    %33 = vector.broadcast %cst_17 : f32 to vector<8x16xf32>
    %34 = arith.cmpf ogt, %9, %33 : vector<8x16xf32>
    %cst_18 = arith.constant 1.000000e-03 : f32
    %35 = vector.broadcast %cst_18 : f32 to vector<8x16xf32>
    %36 = arith.addf %9, %35 : vector<8x16xf32>
    %cst_19 = arith.constant 1.000000e+00 : f32
    %37 = vector.broadcast %cst_19 : f32 to vector<8x16xf32>
    %38 = arith.subf %36, %37 : vector<8x16xf32>
    %39 = arith.mulf %38, %38 : vector<8x16xf32>
    %cst_20 = arith.constant 0.000000e+00 : f32
    %40 = vector.broadcast %cst_20 : f32 to vector<8x16xf32>
    %41 = arith.select %34, %39, %40 : vector<8x16xi1>, vector<8x16xf32>
    %42 = vector.shape_cast %41 : vector<8x16xf32> to vector<1x8x16xf32>
    %cst_21 = arith.constant dense<0.000000e+00> : vector<1xf32>
    %43 = vector.multi_reduction <add>, %42, %cst_21 [1, 2] : vector<1x8x16xf32> to vector<1xf32>
    %44 = vector.shape_cast %43 : vector<1xf32> to vector<1x1x1xf32>
    %45 = vector.extract %44[0, 0, 0] : f32 from vector<1x1x1xf32>
    %46 = arith.addf %32, %45 : f32
    %cst_22 = arith.constant 0.000000e+00 : f32
    %47 = vector.broadcast %cst_22 : f32 to vector<1x128xf32>
    %48 = arith.cmpf olt, %4, %47 : vector<1x128xf32>
    %49 = arith.mulf %4, %4 : vector<1x128xf32>
    %cst_23 = arith.constant 0.000000e+00 : f32
    %50 = vector.broadcast %cst_23 : f32 to vector<1x128xf32>
    %51 = arith.select %48, %49, %50 : vector<1x128xi1>, vector<1x128xf32>
    %52 = vector.shape_cast %51 : vector<1x128xf32> to vector<1x1x128xf32>
    %cst_24 = arith.constant dense<0.000000e+00> : vector<1xf32>
    %53 = vector.multi_reduction <add>, %52, %cst_24 [1, 2] : vector<1x1x128xf32> to vector<1xf32>
    %54 = vector.shape_cast %53 : vector<1xf32> to vector<1x1x1xf32>
    %55 = vector.extract %54[0, 0, 0] : f32 from vector<1x1x1xf32>
    %cst_25 = arith.constant 1.000000e+00 : f32
    %56 = vector.broadcast %cst_25 : f32 to vector<1x128xf32>
    %57 = arith.cmpf ogt, %4, %56 : vector<1x128xf32>
    %cst_26 = arith.constant 1.000000e+00 : f32
    %58 = vector.broadcast %cst_26 : f32 to vector<1x128xf32>
    %59 = arith.subf %58, %4 : vector<1x128xf32>
    %60 = arith.mulf %59, %59 : vector<1x128xf32>
    %cst_27 = arith.constant 0.000000e+00 : f32
    %61 = vector.broadcast %cst_27 : f32 to vector<1x128xf32>
    %62 = arith.select %57, %60, %61 : vector<1x128xi1>, vector<1x128xf32>
    %63 = vector.shape_cast %62 : vector<1x128xf32> to vector<1x1x128xf32>
    %cst_28 = arith.constant dense<0.000000e+00> : vector<1xf32>
    %64 = vector.multi_reduction <add>, %63, %cst_28 [1, 2] : vector<1x1x128xf32> to vector<1xf32>
    %65 = vector.shape_cast %64 : vector<1xf32> to vector<1x1x1xf32>
    %66 = vector.extract %65[0, 0, 0] : f32 from vector<1x1x1xf32>
    %67 = arith.addf %55, %66 : f32
    %68 = vector.extract_strided_slice %4 {offsets = [0, 1], sizes = [1, 127], strides = [1, 1]} : vector<1x128xf32> to vector<1x127xf32>
    %69 = vector.extract_strided_slice %4 {offsets = [0, 0], sizes = [1, 127], strides = [1, 1]} : vector<1x128xf32> to vector<1x127xf32>
    %70 = arith.subf %68, %69 : vector<1x127xf32>
    %71 = vector.extract_strided_slice %70 {offsets = [0, 1], sizes = [1, 126], strides = [1, 1]} : vector<1x127xf32> to vector<1x126xf32>
    %72 = vector.extract_strided_slice %70 {offsets = [0, 0], sizes = [1, 126], strides = [1, 1]} : vector<1x127xf32> to vector<1x126xf32>
    %73 = arith.subf %71, %72 : vector<1x126xf32>
    %74 = arith.mulf %70, %70 : vector<1x127xf32>
    %75 = vector.shape_cast %74 : vector<1x127xf32> to vector<1x1x127xf32>
    %cst_29 = arith.constant dense<0.000000e+00> : vector<1xf32>
    %76 = vector.multi_reduction <add>, %75, %cst_29 [1, 2] : vector<1x1x127xf32> to vector<1xf32>
    %77 = vector.shape_cast %76 : vector<1xf32> to vector<1x1x1xf32>
    %78 = vector.extract %77[0, 0, 0] : f32 from vector<1x1x1xf32>
    %79 = arith.mulf %73, %73 : vector<1x126xf32>
    %80 = vector.shape_cast %79 : vector<1x126xf32> to vector<1x1x126xf32>
    %cst_30 = arith.constant dense<0.000000e+00> : vector<1xf32>
    %81 = vector.multi_reduction <add>, %80, %cst_30 [1, 2] : vector<1x1x126xf32> to vector<1xf32>
    %82 = vector.shape_cast %81 : vector<1xf32> to vector<1x1x1xf32>
    %83 = vector.extract %82[0, 0, 0] : f32 from vector<1x1x1xf32>
    %84 = arith.addf %78, %83 : f32
    %85 = arith.subf %3, %20 : vector<8x128xf32>
    %86 = arith.mulf %85, %85 : vector<8x128xf32>
    %87 = vector.shape_cast %86 : vector<8x128xf32> to vector<1x8x128xf32>
    %cst_31 = arith.constant dense<0.000000e+00> : vector<1xf32>
    %88 = vector.multi_reduction <add>, %87, %cst_31 [1, 2] : vector<1x8x128xf32> to vector<1xf32>
    %89 = vector.shape_cast %88 : vector<1xf32> to vector<1x1x1xf32>
    %90 = vector.extract %89[0, 0, 0] : f32 from vector<1x1x1xf32>
    %cst_32 = arith.constant 1.000000e+02 : f32
    %91 = arith.mulf %cst_32, %84 : f32
    %cst_33 = arith.constant 1.000000e+00 : f32
    %92 = arith.addf %cst_33, %91 : f32
    %cst_34 = arith.constant 1.000000e+02 : f32
    %93 = arith.mulf %cst_34, %46 : f32
    %94 = arith.addf %92, %93 : f32
    %cst_35 = arith.constant 1.000000e+03 : f32
    %95 = arith.mulf %cst_35, %67 : f32
    %96 = arith.addf %94, %95 : f32
    %97 = arith.mulf %90, %96 : f32
    %c0_36 = arith.constant 0 : index
    %c0_37 = arith.constant 0 : index
    %98 = memref.load %arg5[%c0_36, %c0_37] : memref<1x1xf32, #tpu.memory_space<smem>>
    memref.store %97, %arg5[%c0_36, %c0_37] : memref<1x1xf32, #tpu.memory_space<smem>>
    return
  }
}

</mosaic_0001>

<llo_original>
// kernel: tpu_custom_call.1
$region0: #{tpu_custom_call.1}
  #allocation0 [shape = 'u32[]', space=smem, size = 0x4, offset = 0x4, fixed_abs, tag = 'smem constant byte address 0x4 - core index']
  #allocation1 [shape = 'u32[144,128]{1,0:T(1,128)}', space=vmem, size = 0x12000, scoped, tag = 'internal scratch']
  %s0 = inlined_call_operand.hbm [shape: f32[8,16], index: 0, kind: input, shape index: {}]
  %s1 = inlined_call_operand.vmem [shape: f32[1,16], index: 1, kind: input, shape index: {}]
  %s2 = inlined_call_operand.hbm [shape: f32[16,128], index: 2, kind: input, shape index: {}]
  %s3 = inlined_call_operand.vmem [shape: f32[8,128], index: 3, kind: input, shape index: {}]
  %s4 = inlined_call_operand.hbm [shape: f32[8,128], index: 4, kind: output, shape index: {0}]
  %s5 = inlined_call_operand.hbm [shape: f32[1,1], index: 5, kind: output, shape index: {1}]
  %6 = xla_tuple %s4, %s5
  %s7 = sld [smem:[#allocation0]]
  $region42: #{tpu_custom_call.1} parent=0
    _
  %s9 = ssub.s32 1, %s7
  %s10 = scalar_select 0, %s9, %s7
  $region1: #{tpu_custom_call.1} parent=0
    #allocation2 [shape = 'u8[4096]{0}', space=vmem, size = 0x1000, scoped, tag = 'input window, operand 0, single buffered']
    #allocation3 [shape = 's32[1]{0}', space=sflag, size = 0x4, scoped, tag = 'scoped memory for tpu_custom_call.1']
    #allocation4 [shape = 's32[1]{0}', space=sflag, size = 0x4, scoped, tag = 'scoped memory for tpu_custom_call.1']
    #allocation5 [shape = 's32[1]{0}', space=sflag, size = 0x4, scoped, tag = 'scoped memory for tpu_custom_call.1']
    #allocation6 [shape = 'u8[8192]{0}', space=vmem, size = 0x2000, scoped, tag = 'input window, operand 2, single buffered']
    #allocation7 [shape = 's32[1]{0}', space=sflag, size = 0x4, scoped, tag = 'scoped memory for tpu_custom_call.1']
    #allocation8 [shape = 'u8[4096]{0}', space=vmem, size = 0x1000, scoped, tag = 'output window, operand 0, single buffered']
    #allocation9 [shape = 'u8[512]{0}', space=smem, size = 0x200, scoped, tag = 'output window, operand 1, single buffered']
    %11 = vsyncpa [#allocation3], 0
    %12 = vsyncpa [#allocation7], 0
    %13 = vsyncpa [#allocation4], 0
    %14 = vsyncpa [#allocation5], 0
    // Predicated region
    $region2: #{tpu_custom_call.1} parent=1 // pred_check
      _
    $region3: #{tpu_custom_call.1} parent=1 // pred_check_branch
      %16 = sbr.rel (0) target = $region5
    $region4: #{tpu_custom_call.1} parent=1 // pred_region
      %s18 = ssub.s32 128, 128
      %19 = vsyncadd [#allocation3], %s18
      %s21 = sshll.u32 [#allocation2], 4
      %s22 = int_to_ptr.vmem [resolvable:$true] %s21
      %24 = dma.hbm_to_vmem [thread:$0]  %s0, 128, %s22, [#allocation3]
    $region5: #{tpu_custom_call.1} parent=1 // pred_fallthru
      _
    // Predicated region
    $region6: #{tpu_custom_call.1} parent=1 // pred_check
      _
    $region7: #{tpu_custom_call.1} parent=1 // pred_check_branch
      %26 = sbr.rel (0) target = $region9
    $region8: #{tpu_custom_call.1} parent=1 // pred_region
      _
    $region9: #{tpu_custom_call.1} parent=1 // pred_fallthru
      _
    // Predicated region
    $region10: #{tpu_custom_call.1} parent=1 // pred_check
      _
    $region11: #{tpu_custom_call.1} parent=1 // pred_check_branch
      %28 = sbr.rel (0) target = $region13
    $region12: #{tpu_custom_call.1} parent=1 // pred_region
      %s30 = ssub.s32 256, 256
      %31 = vsyncadd [#allocation7], %s30
      %s32 = sshll.u32 [#allocation6], 4
      %s33 = int_to_ptr.vmem [resolvable:$true] %s32
      %38 = dma.hbm_to_vmem [thread:$0]  %s2, 256, %s33, [#allocation7], 128, 128, 8
    $region13: #{tpu_custom_call.1} parent=1 // pred_fallthru
      _
    // Predicated region
    $region14: #{tpu_custom_call.1} parent=1 // pred_check
      _
    $region15: #{tpu_custom_call.1} parent=1 // pred_check_branch
      %40 = sbr.rel (0) target = $region17
    $region16: #{tpu_custom_call.1} parent=1 // pred_region
      _
    $region17: #{tpu_custom_call.1} parent=1 // pred_fallthru
      _
    // Predicated region
    $region18: #{tpu_custom_call.1} parent=1 // pred_check
      _
    $region19: #{tpu_custom_call.1} parent=1 // pred_check_branch
      %42 = sbr.rel (0) target = $region21
    $region20: #{tpu_custom_call.1} parent=1 // pred_region
      %43 = dma.done [#allocation3], 128
    $region21: #{tpu_custom_call.1} parent=1 // pred_fallthru
      _
    // Predicated region
    $region22: #{tpu_custom_call.1} parent=1 // pred_check
      _
    $region23: #{tpu_custom_call.1} parent=1 // pred_check_branch
      %45 = sbr.rel (0) target = $region25
    $region24: #{tpu_custom_call.1} parent=1 // pred_region
      %46 = dma.done [#allocation7], 256
    $region25: #{tpu_custom_call.1} parent=1 // pred_fallthru
      _
    %v47 = vld [vmem:[#allocation2] sm:$0xff]
    %v48 = vld [vmem:[%s1] sm:$0x1]
    %v49 = vld [vmem:[#allocation6] sm:$0xff]
    %v50 = vld [vmem:[#allocation6 + $0x8] sm:$0xff]
    %v51 = vld [vmem:[%s3] sm:$0xff]
    %v52 = vld [vmem:[#allocation6 + $0xf] sm:$0x1]
    %vm53 = vcmask 130048
    %v54 = vsel %vm53, %v47, 0.0
    %55 = vadd.xlane.f32.xlu0 %v54
    %v56 = vpop.xlane.xlu0 %55
    %v57 = vrcp.pop %v56
    %v58 = vmul.f32 %v47, %v57
    %v59 = vrcp.pop %v48
    %v61 = vlaneseq
    %v62 = vshrl.u32 %v61, 7
    %v63 = vsub.s32 0, %v62
    %v64 = vrot.slane %v59, %v63
    %v66 = vmul.f32 %v58, %v64
    %v67 = vsel %vm53, %v66, 0.0
    %68 = vadd.xlane.f32.xlu0 %v67
    %v69 = vpop.xlane.xlu0 %68
    %v70 = vrot.slane %v69, 4
    %v71 = vadd.f32 %v69, %v70
    %v72 = vrot.slane %v71, 2
    %v73 = vadd.f32 %v71, %v72
    %v74 = vrot.slane %v73, 1
    %v75 = vadd.f32 %v73, %v74
    %s76 = vtos %v75
    %v77 = vstv %s76
    %v78 = vrcp.pop %v77
    %s79 = vtos %v78
    %v80 = vstv %s79
    %v81 = vmul.f32 %v66, %v80
    %v83 = vsel %vm53, %v81, 0
    %85 = vmatprep.subr.mxu0 0.0
    %86 = vmatpush1.msra.mxu0 %v49
    %87 = vmatprep.subr.mxu0 0.0
    %88 = vmatpush1.msra.mxu0 %v50
    %89 = vmatprep.subr.mxu0 0.0
    %90 = vmatpush1.msra.mxu0 0.0
    %91 = vmatprep.subr.mxu0 0.0
    %92 = vmatpush1.msra.mxu0 0.0
    %93 = vmatprep.subr.mxu0 0.0
    %94 = vmatpush1.msra.mxu0 0.0
    %95 = vmatprep.subr.mxu0 0.0
    %96 = vmatpush1.msra.mxu0 0.0
    %97 = vmatprep.subr.mxu0 0.0
    %98 = vmatpush1.msra.mxu0 0.0
    %99 = vmatprep.subr.mxu0 0.0
    %100 = vmatpush1.msra.mxu0 0.0
    %101 = vmatprep.subr.mxu0 0.0
    %102 = vmatpush1.msra.mxu0 0.0
    %103 = vmatprep.subr.mxu0 0.0
    %104 = vmatpush1.msra.mxu0 0.0
    %105 = vmatprep.subr.mxu0 0.0
    %106 = vmatpush1.msra.mxu0 0.0
    %107 = vmatprep.subr.mxu0 0.0
    %108 = vmatpush1.msra.mxu0 0.0
    %109 = vmatprep.subr.mxu0 0.0
    %110 = vmatpush1.msra.mxu0 0.0
    %111 = vmatprep.subr.mxu0 0.0
    %112 = vmatpush1.msra.mxu0 0.0
    %113 = vmatprep.subr.mxu0 0.0
    %114 = vmatpush1.msra.mxu0 0.0
    %115 = vmatprep.subr.mxu0 0.0
    %116 = vmatpush1.msra.mxu0 0.0
    %117 = vmatprep.subr.mxu0 0.0
    %118 = vmatpush1.msra.mxu0 0.0
    %119 = vmatprep.subr.mxu0 0.0
    %120 = vmatpush1.msra.mxu0 0.0
    %121 = vmatprep.subr.mxu0 0.0
    %122 = vmatpush1.msra.mxu0 0.0
    %123 = vmatprep.subr.mxu0 0.0
    %124 = vmatpush1.msra.mxu0 0.0
    %125 = vmatprep.subr.mxu0 0.0
    %126 = vmatpush1.msra.mxu0 0.0
    %127 = vmatprep.subr.mxu0 0.0
    %128 = vmatpush1.msra.mxu0 0.0
    %129 = vmatprep.subr.mxu0 0.0
    %130 = vmatpush1.msra.mxu0 0.0
    %131 = vmatprep.subr.mxu0 0.0
    %132 = vmatpush1.msra.mxu0 0.0
    %133 = vmatprep.subr.mxu0 0.0
    %134 = vmatpush1.msra.mxu0 0.0
    %135 = vmatprep.subr.mxu0 0.0
    %136 = vmatpush1.msra.mxu0 0.0
    %137 = vmatprep.subr.mxu0 0.0
    %138 = vmatpush1.msra.mxu0 0.0
    %139 = vmatprep.subr.mxu0 0.0
    %140 = vmatpush1.msra.mxu0 0.0
    %141 = vmatprep.subr.mxu0 0.0
    %142 = vmatpush1.msra.mxu0 0.0
    %143 = vmatprep.subr.mxu0 0.0
    %144 = vmatpush1.msra.mxu0 0.0
    %145 = vmatprep.subr.mxu0 0.0
    %146 = vmatpush1.msra.mxu0 0.0
    %147 = vmatprep.subr.mxu0 0.0
    %148 = vmatpush1.msra.mxu0 0.0
    %149 = vmatprep.mubr.f32.mxu0 0.0
    %150 = vmatmul.mubr.f32.gmra.mrb[0].mxu0 %v83
    %v151 = vpop.f32.mrb[0].mxu0
    %v152 = vadd.f32 0.0, %v151
    %v153 = vpop.f32.mrb[0].mxu0
    %154 = vdwg.mxu0
    %155 = vst [vmem:[#allocation8] sm:$0xff] %v152
    %vm156 = vcmp.lt.f32.partialorder %v58, 0.001
    %v157 = vsub.f32 %v58, 0.001
    %v158 = vmul.f32 %v157, %v157
    %v159 = vsel %vm156, %v158, 0.0
    %v160 = vsel %vm53, %v159, 0.0
    %161 = vadd.xlane.f32.xlu0 %v160
    %v162 = vpop.xlane.xlu0 %161
    %v163 = vrot.slane %v162, 4
    %v164 = vadd.f32 %v162, %v163
    %v165 = vrot.slane %v164, 2
    %v166 = vadd.f32 %v164, %v165
    %v167 = vrot.slane %v166, 1
    %v168 = vadd.f32 %v166, %v167
    %s169 = vtos %v168
    %vm170 = vcmp.gt.f32.partialorder %v58, 0.999
    %v171 = vadd.f32 %v58, 0.001
    %v172 = vsub.f32 %v171, 1.0
    %v173 = vmul.f32 %v172, %v172
    %v174 = vsel %vm170, %v173, 0.0
    %v175 = vsel %vm53, %v174, 0.0
    %176 = vadd.xlane.f32.xlu0 %v175
    %v177 = vpop.xlane.xlu0 %176
    %v178 = vrot.slane %v177, 4
    %v179 = vadd.f32 %v177, %v178
    %v180 = vrot.slane %v179, 2
    %v181 = vadd.f32 %v179, %v180
    %v182 = vrot.slane %v181, 1
    %v183 = vadd.f32 %v181, %v182
    %s184 = vtos %v183
    %s185 = sadd.f32 %s169, %s184
    %vm186 = vcmp.lt.f32.partialorder %v52, 0.0
    %v187 = vmul.f32 %v52, %v52
    %v188 = vsel %vm186, %v187, 0.0
    %vm189 = vcmask 1040384
    %v190 = vsel %vm189, %v188, 0.0
    %191 = vadd.xlane.f32.xlu0 %v190
    %v192 = vpop.xlane.xlu0 %191
    %v193 = vrot.slane %v192, 4
    %v194 = vadd.f32 %v192, %v193
    %v195 = vrot.slane %v194, 2
    %v196 = vadd.f32 %v194, %v195
    %v197 = vrot.slane %v196, 1
    %v198 = vadd.f32 %v196, %v197
    %s199 = vtos %v198
    %vm200 = vcmp.gt.f32.partialorder %v52, 1.0
    %v201 = vsub.f32 1.0, %v52
    %v202 = vmul.f32 %v201, %v201
    %v203 = vsel %vm200, %v202, 0.0
    %v204 = vsel %vm189, %v203, 0.0
    %205 = vadd.xlane.f32.xlu0 %v204
    %v206 = vpop.xlane.xlu0 %205
    %v207 = vrot.slane %v206, 4
    %v208 = vadd.f32 %v206, %v207
    %v209 = vrot.slane %v208, 2
    %v210 = vadd.f32 %v208, %v209
    %v211 = vrot.slane %v210, 1
    %v212 = vadd.f32 %v210, %v211
    %s213 = vtos %v212
    %s214 = sadd.f32 %s199, %s213
    %216 = vrot.lane.b32.xlu0 %v52, 1
    %v217 = vpop.permute.xlu0 %216
    %v219 = vsub.f32 %v52, %v217
    %221 = vrot.lane.b32.xlu0 %v219, 1
    %v222 = vpop.permute.xlu0 %221
    %v224 = vsub.f32 %v219, %v222
    %v225 = vmul.f32 %v219, %v219
    %227 = vrot.lane.b32.xlu0 %v225, 127
    %v228 = vpop.permute.xlu0 %227
    %vm230 = vcmask 1032192
    %v231 = vsel %vm230, %v228, 0.0
    %232 = vadd.xlane.f32.xlu0 %v231
    %v233 = vpop.xlane.xlu0 %232
    %v234 = vrot.slane %v233, 4
    %v235 = vadd.f32 %v233, %v234
    %v236 = vrot.slane %v235, 2
    %v237 = vadd.f32 %v235, %v236
    %v238 = vrot.slane %v237, 1
    %v239 = vadd.f32 %v237, %v238
    %s240 = vtos %v239
    %v241 = vmul.f32 %v224, %v224
    %243 = vrot.lane.b32.xlu0 %v241, 126
    %v244 = vpop.permute.xlu0 %243
    %vm246 = vcmask 1024000
    %v247 = vsel %vm246, %v244, 0.0
    %248 = vadd.xlane.f32.xlu0 %v247
    %v249 = vpop.xlane.xlu0 %248
    %v250 = vrot.slane %v249, 4
    %v251 = vadd.f32 %v249, %v250
    %v252 = vrot.slane %v251, 2
    %v253 = vadd.f32 %v251, %v252
    %v254 = vrot.slane %v253, 1
    %v255 = vadd.f32 %v253, %v254
    %s256 = vtos %v255
    %s257 = sadd.f32 %s240, %s256
    %v258 = vsub.f32 %v51, %v152
    %v259 = vmul.f32 %v258, %v258
    %260 = vadd.xlane.f32.xlu0 %v259
    %v261 = vpop.xlane.xlu0 %260
    %v262 = vrot.slane %v261, 4
    %v263 = vadd.f32 %v261, %v262
    %v264 = vrot.slane %v263, 2
    %v265 = vadd.f32 %v263, %v264
    %v266 = vrot.slane %v265, 1
    %v267 = vadd.f32 %v265, %v266
    %s268 = vtos %v267
    %s269 = smul.f32 %s257, 100.0
    %s270 = sadd.f32 %s269, 1.0
    %s271 = smul.f32 %s185, 100.0
    %s272 = sadd.f32 %s270, %s271
    %s273 = smul.f32 %s214, 1000.0
    %s274 = sadd.f32 %s272, %s273
    %s275 = smul.f32 %s268, %s274
    %s276 = scalar_lea.smem [#allocation9], 0
    %277 = sst [smem:[%s276]] %s275
    // Predicated region
    $region26: #{tpu_custom_call.1} parent=1 // pred_check
      _
    $region27: #{tpu_custom_call.1} parent=1 // pred_check_branch
      %279 = sbr.rel (0) target = $region29
    $region28: #{tpu_custom_call.1} parent=1 // pred_region
      %s281 = ssub.s32 128, 128
      %282 = vsyncadd [#allocation4], %s281
      %s284 = sshll.u32 [#allocation8], 4
      %s285 = int_to_ptr.vmem [resolvable:$true] %s284
      %287 = dma.vmem_to_hbm [thread:$0]  %s285, 128, %s4, [#allocation4]
    $region29: #{tpu_custom_call.1} parent=1 // pred_fallthru
      _
    // Predicated region
    $region30: #{tpu_custom_call.1} parent=1 // pred_check
      _
    $region31: #{tpu_custom_call.1} parent=1 // pred_check_branch
      %289 = sbr.rel (0) target = $region33
    $region32: #{tpu_custom_call.1} parent=1 // pred_region
      %s291 = ssub.s32 16, 16
      %292 = vsyncadd [#allocation5], %s291
      %295 = dma.smem_to_hbm [#allocation9], 16, %s5, [#allocation5]
    $region33: #{tpu_custom_call.1} parent=1 // pred_fallthru
      _
    // Predicated region
    $region34: #{tpu_custom_call.1} parent=1 // pred_check
      _
    $region35: #{tpu_custom_call.1} parent=1 // pred_check_branch
      %297 = sbr.rel (0) target = $region37
    $region36: #{tpu_custom_call.1} parent=1 // pred_region
      %298 = dma.done [#allocation4], 128
    $region37: #{tpu_custom_call.1} parent=1 // pred_fallthru
      _
    // Predicated region
    $region38: #{tpu_custom_call.1} parent=1 // pred_check
      _
    $region39: #{tpu_custom_call.1} parent=1 // pred_check_branch
      %300 = sbr.rel (0) target = $region41
    $region40: #{tpu_custom_call.1} parent=1 // pred_region
      %301 = dma.done [#allocation5], 16
    $region41: #{tpu_custom_call.1} parent=1 // pred_fallthru
      _
    %302 = sfence
    %303 = vsyncpa [#allocation3], 1
    %304 = vsyncpa [#allocation7], 1
    %305 = vsyncpa [#allocation4], 1
    %306 = vsyncpa [#allocation5], 1

</llo_original>
